<compile_context>
chip_gen: v5e
topology: v5e:2x2
jax: 0.10.0
libtpu: 0.0.40
codegen_flags: <defaults>
</compile_context>

<pallas_src>
import jax
import jax.numpy as jnp
import numpy as np
from jax import lax
from jax.experimental import pallas as pl
from jax.experimental.pallas import tpu as pltpu

_GSZ = 16            # rows per in-register group (multiple of 8; bf16-safe 16)
_PAD_LOGIT = -30000.0  # softplus(pad) == 0 and t*pad == 0 with t == 0 (fallback path)


def _round_up(x, m):
    return ((x + m - 1) // m) * m


def _cdiv(a, b):
    return -(-a // b)


def _tpu_config():
    """Crude generation detection -> (cores per chip, block bytes, VMEM cap)."""
    kind = ""
    try:
        kind = (jax.devices()[0].device_kind or "")
    except Exception:
        pass
    k = kind.lower()
    if "v7" in k or "7x" in k:
        # 2 TensorCores, 64 MiB VMEM/TC, ~3.2 TB/s HBM -> smaller blocks, tight cap.
        return {"cores": 2, "tile_bytes": 4 << 20, "vmem_cap": 48 << 20}
    if "v6" in k:
        return {"cores": 1, "tile_bytes": 8 << 20, "vmem_cap": 96 << 20}
    if "v5e" in k or "v5 lite" in k or "v5lite" in k:
        return {"cores": 1, "tile_bytes": 8 << 20, "vmem_cap": 96 << 20}
    if "v5" in k or "v4" in k:
        # v5p / v4: megacore (2 TCs), 128 MiB VMEM.
        return {"cores": 2, "tile_bytes": 8 << 20, "vmem_cap": 96 << 20}
    # Unknown part: conservative.
    return {"cores": 1, "tile_bytes": 4 << 20, "vmem_cap": 32 << 20}


def _stable_bce(x, t):
    # softplus(x) - t*x  ==  -(t*log(sigmoid(x)) + (1-t)*log(1-sigmoid(x)))
    return jnp.maximum(x, 0.0) - t * x + jnp.log1p(jnp.exp(-jnp.abs(x)))


def _make_reduce_kernel(tm, N, gsz, steps, rows_valid, needs_mask):
    n_groups = tm // gsz

    def kernel(x_ref, t_ref, out_ref):
        s = pl.program_id(0)   # 'parallel' split axis (megacore on 2-TC chips)
        i = pl.program_id(1)   # 'arbitrary' reduction axis

        @pl.when(i == 0)
        def _():
            out_ref[...] = jnp.zeros_like(out_ref)

        gb = s * steps + i     # unclamped global block index (for row masking)

        def body(g, acc):
            r = pl.multiple_of(g * gsz, gsz)
            x = x_ref[pl.ds(r, gsz), :].astype(jnp.float32)
            t = t_ref[pl.ds(r, gsz), :].astype(jnp.float32)
            loss = _stable_bce(x, t)
            if needs_mask:
                rows = (gb * tm + r
                        + lax.broadcasted_iota(jnp.int32, (gsz, 1), 0))
                loss = jnp.where(rows < rows_valid, loss, 0.0)
            # Fold the gsz rows into the 8-sublane register accumulator.
            return acc + loss.reshape(gsz // 8, 8, N).sum(axis=0)

        acc = lax.fori_loop(0, n_groups, body, jnp.zeros((8, N), jnp.float32))
        out_ref[...] += acc[None]

    return kernel


def _make_none_kernel(tm, N, gsz):
    n_groups = tm // gsz

    def kernel(x_ref, t_ref, o_ref):
        def body(g, carry):
            r = pl.multiple_of(g * gsz, gsz)
            x = x_ref[pl.ds(r, gsz), :].astype(jnp.float32)
            t = t_ref[pl.ds(r, gsz), :].astype(jnp.float32)
            o_ref[pl.ds(r, gsz), :] = _stable_bce(x, t).astype(o_ref.dtype)
            return carry

        lax.fori_loop(0, n_groups, body, 0)

    return kernel


def my_bce_loss_with_logits(logits, target, reduction="mean", *,
                            max_tile_rows=None, n_split=None):
    """Pallas TPU implementation of MyBCELossWithLogits.forward."""
    if reduction not in ("mean", "sum", "none"):
        raise ValueError(f"unknown reduction: {reduction}")

    cfg = _tpu_config()
    orig_shape = logits.shape
    orig_dtype = logits.dtype
    total = int(np.prod(orig_shape)) if len(orig_shape) else 1

    xf = logits.reshape(-1)
    tf = target.reshape(-1)

    # ---- lane width: zero-copy (free reshape) whenever total % 128 == 0 ----
    N = None
    for cand in (512, 256, 128):
        if total % cand == 0:
            N = cand
            break
    work_total = total
    if N is None:
        # Fallback for awkward sizes: minimal pad (<128 elems) to a 128
        # multiple; this is the only case that copies the inputs.  Pad logit
        # -30000 with pad target 0 yields exactly zero loss.
        pad = (-total) % 128
        xf = jnp.pad(xf, (0, pad), constant_values=_PAD_LOGIT)
        tf = jnp.pad(tf, (0, pad))
        work_total = total + pad
        for cand in (512, 256, 128):
            if work_total % cand == 0:
                N = cand
                break

    M0 = work_total // N
    x2 = xf.reshape(M0, N)      # free bitcast reshape
    t2 = tf.reshape(M0, N)

    gsz = _GSZ
    in_item = x2.dtype.itemsize + t2.dtype.itemsize

    # ---- tile rows: generation-aware byte budget, multiple of gsz ----
    tm = cfg["tile_bytes"] // (N * 4)
    if max_tile_rows is not None:
        tm = min(tm, int(max_tile_rows))
    tm = max(gsz, (tm // gsz) * gsz)
    tm = min(tm, _round_up(M0, gsz))
    n_blocks = _cdiv(M0, tm)

    if reduction == "none":
        vmem_need = 2 * tm * N * in_item + 2 * tm * N * jnp.dtype(orig_dtype).itemsize
        vmem_limit = int(min(max(vmem_need + (4 << 20), 32 << 20), cfg["vmem_cap"]))
        out = pl.pallas_call(
            _make_none_kernel(tm, N, gsz),
            out_shape=jax.ShapeDtypeStruct((M0, N), orig_dtype),
            grid_spec=pltpu.PrefetchScalarGridSpec(
                num_scalar_prefetch=0,
                grid=(n_blocks,),
                in_specs=[pl.BlockSpec((tm, N), lambda i: (i, 0)),
                          pl.BlockSpec((tm, N), lambda i: (i, 0))],
                out_specs=pl.BlockSpec((tm, N), lambda i: (i, 0)),
            ),
            compiler_params=pltpu.CompilerParams(
                dimension_semantics=("parallel",),
                vmem_limit_bytes=vmem_limit),
            cost_estimate=pl.CostEstimate(
                flops=6 * work_total, transcendentals=2 * work_total,
                bytes_accessed=work_total * in_item
                + work_total * jnp.dtype(orig_dtype).itemsize),
        )(x2, t2)
        if work_total == total:
            return out.reshape(orig_shape)
        return out.reshape(-1)[:total].reshape(orig_shape)

    # ---- reduction == 'mean' / 'sum' ----
    if n_split is None:
        split = 2 if (cfg["cores"] >= 2 and n_blocks >= 2) else 1
    else:
        split = max(1, int(n_split))
    steps = _cdiv(n_blocks, split)
    last_block = n_blocks - 1
    needs_mask = (split * steps * tm) != M0   # grid covers more rows than M0

    # Clamp the block index so the (at most one) round-up step per split stays
    # in bounds; its contribution is zeroed by the in-kernel row mask.
    idx_map = lambda s, i: (jnp.minimum(s * steps + i, last_block), 0)

    vmem_need = 2 * tm * N * in_item
    vmem_limit = int(min(max(vmem_need + (4 << 20), 32 << 20), cfg["vmem_cap"]))

    partials = pl.pallas_call(
        _make_reduce_kernel(tm, N, gsz, steps, M0, needs_mask),
        out_shape=jax.ShapeDtypeStruct((split, 8, N), jnp.float32),
        grid_spec=pltpu.PrefetchScalarGridSpec(
            num_scalar_prefetch=0,
            grid=(split, steps),
            in_specs=[pl.BlockSpec((tm, N), idx_map),
                      pl.BlockSpec((tm, N), idx_map)],
            out_specs=pl.BlockSpec((1, 8, N), lambda s, i: (s, 0, 0)),
        ),
        compiler_params=pltpu.CompilerParams(
            dimension_semantics=("parallel", "arbitrary"),
            vmem_limit_bytes=vmem_limit),
        cost_estimate=pl.CostEstimate(
            flops=8 * work_total, transcendentals=2 * work_total,
            bytes_accessed=work_total * in_item + split * 8 * N * 4),
    )(x2, t2)

    # Tiny epilogue reduce of split*8*N partials (outside the hot loop).
    loss_sum = jnp.sum(partials)
    if reduction == "mean":
        return loss_sum / jnp.float32(total)
    return loss_sum


def _reference(logits, target, reduction="mean"):
    x = logits.astype(jnp.float32)
    t = target.astype(jnp.float32)
    out = t * jax.nn.log_sigmoid(x) + (1.0 - t) * jax.nn.log_sigmoid(-x)
    if reduction == "mean":
        return -jnp.mean(out)
    if reduction == "sum":
        return -jnp.sum(out)
    return -out


if __name__ == "__main__":
    key = jax.random.PRNGKey(0)
    ks = jax.random.split(key, 8)

    # Case 1: lane-aligned small shape -> zero-copy path, single block.
    logits = jax.random.normal(ks[0], (16, 128), dtype=jnp.float32)
    target = (jax.random.uniform(ks[1], (16, 128)) > 0.5).astype(jnp.float32)
    for red in ("mean", "sum", "none"):
        got = jax.block_until_ready(my_bce_loss_with_logits(logits, target, red))
        ref = _reference(logits, target, red)
        assert jnp.allclose(got, ref, rtol=1e-5, atol=1e-4), (red, got, ref)

    # Case 2: aligned shape, forced multi-block + forced 2-way split
    # (covers the masked-remainder megacore reduce path on any chip).
    logits2 = jax.random.normal(ks[2], (48, 256), dtype=jnp.float32) * 4.0
    target2 = (jax.random.uniform(ks[3], (48, 256)) > 0.5).astype(jnp.float32)
    for red in ("mean", "sum", "none"):
        got = jax.block_until_ready(
            my_bce_loss_with_logits(logits2, target2, red,
                                    max_tile_rows=16, n_split=2))
        ref = _reference(logits2, target2, red)
        assert jnp.allclose(got, ref, rtol=1e-5, atol=1e-4), (red, got, ref)

    # Case 3: odd, non-128-divisible shape -> minimal-pad fallback path.
    logits3 = jax.random.normal(ks[4], (13, 61, 11), dtype=jnp.float32) * 6.0
    target3 = (jax.random.uniform(ks[5], (13, 61, 11)) > 0.5).astype(jnp.float32)
    for red in ("mean", "sum", "none"):
        got = jax.block_until_ready(
            my_bce_loss_with_logits(logits3, target3, red, max_tile_rows=16))
        ref = _reference(logits3, target3, red)
        assert jnp.allclose(got, ref, rtol=1e-5, atol=1e-4), (red, got, ref)

    # Case 4: bf16 inputs -- 'none' output preserves the input dtype.
    logits4 = jax.random.normal(ks[6], (2, 4, 16, 16), dtype=jnp.bfloat16)
    target4 = (jax.random.uniform(ks[7], (2, 4, 16, 16)) > 0.5).astype(jnp.bfloat16)
    out4 = jax.block_until_ready(my_bce_loss_with_logits(logits4, target4, "none"))
    assert out4.dtype == jnp.bfloat16 and out4.shape == logits4.shape
    ref4 = _reference(logits4, target4, "none")
    assert jnp.allclose(out4.astype(jnp.float32), ref4, rtol=2e-2, atol=2e-2)
    m4 = jax.block_until_ready(my_bce_loss_with_logits(logits4, target4, "mean"))
    assert jnp.allclose(m4, _reference(logits4, target4, "mean"),
                        rtol=1e-3, atol=1e-3)

    print("KERNEL_OK")
</pallas_src>

<mosaic_0001>
module attributes {stable_mosaic.version = 11 : i64} {
  func.func @kernel(%arg0: i32, %arg1: i32, %arg2: memref<16x512xf32, #tpu.memory_space<vmem>>, %arg3: memref<16x512xf32, #tpu.memory_space<vmem>>, %arg4: memref<1x8x512xf32, #tpu.memory_space<vmem>>) attributes {dimension_semantics = [#tpu.dimension_semantics<parallel>, #tpu.dimension_semantics<arbitrary>], iteration_bounds = array<i64: 1, 1>, scalar_prefetch = 0 : i64, scratch_operands = 0 : i64, tpu.core_type = #tpu.core_type<tc>, window_params = [{transform_indices = @transform_0, window_bounds = array<i64: 16, 512>}, {transform_indices = @transform_1, window_bounds = array<i64: 16, 512>}, {transform_indices = @transform_2, window_bounds = array<i64: 1, 8, 512>}]} {
    %c0_i32 = arith.constant 0 : i32
    %0 = arith.cmpi eq, %arg1, %c0_i32 : i32
    %1 = arith.extui %0 : i1 to i32
    %c0_i32_0 = arith.constant 0 : i32
    %2 = arith.cmpi ne, %1, %c0_i32_0 : i32
    scf.if %2 {
      %cst_15 = arith.constant 0.000000e+00 : f32
      %40 = vector.broadcast %cst_15 : f32 to vector<1x8x512xf32>
      %c0_16 = arith.constant 0 : index
      %c0_17 = arith.constant 0 : index
      %c0_18 = arith.constant 0 : index
      %41 = vector.load %arg4[%c0_16, %c0_17, %c0_18] : memref<1x8x512xf32, #tpu.memory_space<vmem>>, vector<1x8x512xf32>
      tpu.vector_store %arg4[%c0_16, %c0_17, %c0_18], %40 {strides = array<i32>} : memref<1x8x512xf32, #tpu.memory_space<vmem>>, vector<1x8x512xf32>,
    } else {
    }
    %c1_i32 = arith.constant 1 : i32
    %3 = arith.muli %arg0, %c1_i32 : i32
    %4 = arith.addi %3, %arg1 : i32
    %cst = arith.constant 0.000000e+00 : f32
    %5 = vector.broadcast %cst : f32 to vector<8x512xf32>
    %c0_i32_1 = arith.constant 0 : i32
    %c16_i32 = arith.constant 16 : i32
    %6 = arith.muli %c0_i32_1, %c16_i32 : i32
    %7 = tpu.assume_multiple %6, 16 : i32
    %8 = arith.index_cast %7 : i32 to index
    %c0 = arith.constant 0 : index
    %9 = vector.load %arg2[%8, %c0] : memref<16x512xf32, #tpu.memory_space<vmem>>, vector<16x512xf32>
    %10 = arith.index_cast %7 : i32 to index
    %c0_2 = arith.constant 0 : index
    %11 = vector.load %arg3[%10, %c0_2] : memref<16x512xf32, #tpu.memory_space<vmem>>, vector<16x512xf32>
    %cst_3 = arith.constant 0.000000e+00 : f32
    %12 = vector.broadcast %cst_3 : f32 to vector<16x512xf32>
    %13 = arith.maximumf %9, %12 : vector<16x512xf32>
    %14 = arith.mulf %11, %9 : vector<16x512xf32>
    %15 = arith.subf %13, %14 : vector<16x512xf32>
    %16 = math.absf %9 : vector<16x512xf32>
    %cst_4 = arith.constant 0.000000e+00 : f32
    %17 = vector.broadcast %cst_4 : f32 to vector<16x512xf32>
    %18 = arith.subf %17, %16 : vector<16x512xf32>
    %19 = math.exp %18 : vector<16x512xf32>
    %20 = math.log1p %19 : vector<16x512xf32>
    %21 = arith.addf %15, %20 : vector<16x512xf32>
    %c16_i32_5 = arith.constant 16 : i32
    %22 = arith.muli %4, %c16_i32_5 : i32
    %23 = arith.addi %22, %7 : i32
    %24 = tpu.iota {dimensions = array<i32: 0>} : vector<16x1xi32>
    %25 = vector.broadcast %23 : i32 to vector<16x1xi32>
    %26 = arith.addi %25, %24 : vector<16x1xi32>
    %c4_i32 = arith.constant 4 : i32
    %27 = vector.broadcast %c4_i32 : i32 to vector<16x1xi32>
    %28 = arith.cmpi slt, %26, %27 : vector<16x1xi32>
    %cst_6 = arith.constant 0.000000e+00 : f32
    %29 = vector.shape_cast %28 : vector<16x1xi1> to vector<16x1xi1>
    %30 = vector.broadcast %29 : vector<16x1xi1> to vector<16x512xi1>
    %31 = vector.broadcast %cst_6 : f32 to vector<16x512xf32>
    %32 = arith.select %30, %21, %31 : vector<16x512xi1>, vector<16x512xf32>
    %33 = vector.shape_cast %32 : vector<16x512xf32> to vector<2x8x512xf32>
    %cst_7 = arith.constant dense<0.000000e+00> : vector<8x512xf32>
    %34 = vector.multi_reduction <add>, %33, %cst_7 [0] : vector<2x8x512xf32> to vector<8x512xf32>
    %35 = arith.addf %5, %34 : vector<8x512xf32>
    %c1_i32_8 = arith.constant 1 : i32
    %c0_9 = arith.constant 0 : index
    %c0_10 = arith.constant 0 : index
    %c0_11 = arith.constant 0 : index
    %36 = vector.load %arg4[%c0_9, %c0_10, %c0_11] : memref<1x8x512xf32, #tpu.memory_space<vmem>>, vector<1x8x512xf32>
    %37 = vector.shape_cast %35 : vector<8x512xf32> to vector<1x8x512xf32>
    %38 = arith.addf %36, %37 : vector<1x8x512xf32>
    %c0_12 = arith.constant 0 : index
    %c0_13 = arith.constant 0 : index
    %c0_14 = arith.constant 0 : index
    %39 = vector.load %arg4[%c0_12, %c0_13, %c0_14] : memref<1x8x512xf32, #tpu.memory_space<vmem>>, vector<1x8x512xf32>
    tpu.vector_store %arg4[%c0_12, %c0_13, %c0_14], %38 {strides = array<i32>} : memref<1x8x512xf32, #tpu.memory_space<vmem>>, vector<1x8x512xf32>,
    return
  }
  func.func @transform_0(%arg0: i32, %arg1: i32) -> (i32, i32) {
    %c1_i32 = arith.constant 1 : i32
    %0 = arith.muli %arg0, %c1_i32 : i32
    %1 = arith.addi %0, %arg1 : i32
    %c0_i32 = arith.constant 0 : i32
    %2 = arith.minsi %1, %c0_i32 : i32
    %c0_i32_0 = arith.constant 0 : i32
    %c0_i32_1 = arith.constant 0 : i32
    return %2, %c0_i32_0 : i32, i32
  }
  func.func @transform_1(%arg0: i32, %arg1: i32) -> (i32, i32) {
    %c1_i32 = arith.constant 1 : i32
    %0 = arith.muli %arg0, %c1_i32 : i32
    %1 = arith.addi %0, %arg1 : i32
    %c0_i32 = arith.constant 0 : i32
    %2 = arith.minsi %1, %c0_i32 : i32
    %c0_i32_0 = arith.constant 0 : i32
    %c0_i32_1 = arith.constant 0 : i32
    return %2, %c0_i32_0 : i32, i32
  }
  func.func @transform_2(%arg0: i32, %arg1: i32) -> (i32, i32, i32) {
    %c0_i32 = arith.constant 0 : i32
    %c0_i32_0 = arith.constant 0 : i32
    %c0_i32_1 = arith.constant 0 : i32
    return %arg0, %c0_i32, %c0_i32_0 : i32, i32, i32
  }
}

</mosaic_0001>

<llo_original>
// kernel: tpu_custom_call.1
$region0: #{tpu_custom_call.1}
  #allocation0 [shape = 'u32[]', space=smem, size = 0x4, offset = 0x4, fixed_abs, tag = 'smem constant byte address 0x4 - core index']
  #allocation1 [shape = 'u32[72,128]{1,0:T(1,128)}', space=vmem, size = 0x9000, scoped, tag = 'internal scratch']
  %s0 = inlined_call_operand.hbm [shape: f32[4,512], index: 0, kind: input, shape index: {}]
  %s1 = inlined_call_operand.hbm [shape: f32[4,512], index: 1, kind: input, shape index: {}]
  %s2 = inlined_call_operand.hbm [shape: f32[1,8,512], index: 2, kind: output, shape index: {}]
  %s3 = sld [smem:[#allocation0]]
  $region30: #{tpu_custom_call.1} parent=0
    _
  %s5 = ssub.s32 1, %s3
  %s6 = scalar_select 0, %s5, %s3
  $region1: #{tpu_custom_call.1} parent=0
    #allocation2 [shape = 'u8[32768]{0}', space=vmem, size = 0x8000, scoped, tag = 'input window, operand 0, single buffered']
    #allocation3 [shape = 's32[1]{0}', space=sflag, size = 0x4, scoped, tag = 'scoped memory for tpu_custom_call.1']
    #allocation4 [shape = 's32[1]{0}', space=sflag, size = 0x4, scoped, tag = 'scoped memory for tpu_custom_call.1']
    #allocation5 [shape = 'u8[32768]{0}', space=vmem, size = 0x8000, scoped, tag = 'input window, operand 1, single buffered']
    #allocation6 [shape = 's32[1]{0}', space=sflag, size = 0x4, scoped, tag = 'scoped memory for tpu_custom_call.1']
    #allocation7 [shape = 'u8[16384]{0}', space=vmem, size = 0x4000, scoped, tag = 'output window, operand 0, single buffered']
    %7 = vsyncpa [#allocation3], 0
    %8 = vsyncpa [#allocation6], 0
    %9 = vsyncpa [#allocation4], 0
    // Predicated region
    $region2: #{tpu_custom_call.1} parent=1 // pred_check
      _
    $region3: #{tpu_custom_call.1} parent=1 // pred_check_branch
      %11 = sbr.rel (0) target = $region5
    $region4: #{tpu_custom_call.1} parent=1 // pred_region
      %s12 = sadd.s32 0, 0
      %p13 = scmp.lt.s32.totalorder %s12, 0
      %s14 = scalar_select %p13, %s12, 0
      %s15 = smul.u32 4, %s14
      %s16 = ssub.s32 1, %s15
      %s17 = smul.u32 4, %s16
      %s18 = smul.u32 %s17, 4
      %s19 = ssub.s32 64, %s18
      %s20 = sshll.u32 %s19, 4
      %21 = vsyncadd [#allocation3], %s20
      %p22 = scmp.ne.s32.totalorder 0, %s18
      %s23 = smul.addr %s15, 4
      %s24 = smul.addr %s23, 4
      %s25 = scalar_lea.hbm %s0, %s24
      %s26 = smul.u32 16, %s16
      %s27 = sshll.u32 %s25, 4
      %s28 = int_to_ptr.hbm [resolvable:$true] %s27
      %s29 = sshll.u32 [#allocation2], 4
      %s30 = int_to_ptr.vmem [resolvable:$true] %s29
      %s31 = sshll.u32 %s26, 4
      %35 = dma.hbm_to_vmem [thread:$0]  (%p22), %s28, %s31, %s30, [#allocation3], 256, 256, 16
    $region5: #{tpu_custom_call.1} parent=1 // pred_fallthru
      _
    // Predicated region
    $region6: #{tpu_custom_call.1} parent=1 // pred_check
      _
    $region7: #{tpu_custom_call.1} parent=1 // pred_check_branch
      %37 = sbr.rel (0) target = $region9
    $region8: #{tpu_custom_call.1} parent=1 // pred_region
      %s38 = sadd.s32 0, 0
      %p39 = scmp.lt.s32.totalorder %s38, 0
      %s40 = scalar_select %p39, %s38, 0
      %s41 = smul.u32 4, %s40
      %s42 = ssub.s32 1, %s41
      %s43 = smul.u32 4, %s42
      %s44 = smul.u32 %s43, 4
      %s45 = ssub.s32 64, %s44
      %s46 = sshll.u32 %s45, 4
      %47 = vsyncadd [#allocation6], %s46
      %p48 = scmp.ne.s32.totalorder 0, %s44
      %s49 = smul.addr %s41, 4
      %s50 = smul.addr %s49, 4
      %s51 = scalar_lea.hbm %s1, %s50
      %s52 = smul.u32 16, %s42
      %s53 = sshll.u32 %s51, 4
      %s54 = int_to_ptr.hbm [resolvable:$true] %s53
      %s55 = sshll.u32 [#allocation5], 4
      %s56 = int_to_ptr.vmem [resolvable:$true] %s55
      %s57 = sshll.u32 %s52, 4
      %61 = dma.hbm_to_vmem [thread:$0]  (%p48), %s54, %s57, %s56, [#allocation6], 256, 256, 16
    $region9: #{tpu_custom_call.1} parent=1 // pred_fallthru
      _
    // Predicated region
    $region10: #{tpu_custom_call.1} parent=1 // pred_check
      _
    $region11: #{tpu_custom_call.1} parent=1 // pred_check_branch
      %63 = sbr.rel (0) target = $region13
    $region12: #{tpu_custom_call.1} parent=1 // pred_region
      %65 = dma.done [#allocation3], 1024
    $region13: #{tpu_custom_call.1} parent=1 // pred_fallthru
      _
    // Predicated region
    $region14: #{tpu_custom_call.1} parent=1 // pred_check
      _
    $region15: #{tpu_custom_call.1} parent=1 // pred_check_branch
      %67 = sbr.rel (0) target = $region17
    $region16: #{tpu_custom_call.1} parent=1 // pred_region
      %69 = dma.done [#allocation6], 1024
    $region17: #{tpu_custom_call.1} parent=1 // pred_fallthru
      _
    %s70 = sadd.s32 0, 0
    %p71 = scmp.lt.s32.totalorder %s70, 0
    %s72 = scalar_select %p71, %s70, 0
    %s73 = smul.u32 4, %s72
    %s74 = ssub.s32 1, %s73
    %s75 = smul.u32 4, %s74
    %s76 = smul.u32 %s75, 4
    %s77 = sadd.s32 0, 0
    %p78 = scmp.lt.s32.totalorder %s77, 0
    %s79 = scalar_select %p78, %s77, 0
    %s80 = smul.u32 4, %s79
    %s81 = ssub.s32 1, %s80
    %s82 = smul.u32 4, %s81
    %s83 = smul.u32 %s82, 4
    %p84 = scmp.eq.s32.totalorder 0, 0
    // Predicated region
    $region18: #{tpu_custom_call.1} parent=1 // pred_check
      %p85 = pneg %p84
    $region19: #{tpu_custom_call.1} parent=1 // pred_check_branch
      %87 = sbr.rel (%p85) target = $region21
    $region20: #{tpu_custom_call.1} parent=1 // pred_region
      %88 = vst [vmem:[#allocation7] sm:$0xff] 0.0
      %89 = vst [vmem:[#allocation7 + $0x8] sm:$0xff] 0.0
      %90 = vst [vmem:[#allocation7 + $0x10] sm:$0xff] 0.0
      %91 = vst [vmem:[#allocation7 + $0x18] sm:$0xff] 0.0
    $region21: #{tpu_custom_call.1} parent=1 // pred_fallthru
      _
    %s92 = sadd.s32 0, 0
    %s93 = smul.u32 0, 4
    %s94 = smul.addr %s93, 4
    %s95 = scalar_lea.vmem [#allocation2], %s94
    %v96 = vld [vmem:[%s95] sm:$0xff]
    %v97 = vld [vmem:[%s95 + $0x8] sm:$0xff]
    %v98 = vld [vmem:[%s95 + $0x10] sm:$0xff]
    %v99 = vld [vmem:[%s95 + $0x18] sm:$0xff]
    %v100 = vld [vmem:[%s95 + $0x20] sm:$0xff]
    %v101 = vld [vmem:[%s95 + $0x28] sm:$0xff]
    %v102 = vld [vmem:[%s95 + $0x30] sm:$0xff]
    %v103 = vld [vmem:[%s95 + $0x38] sm:$0xff]
    %s104 = smul.addr %s93, 4
    %s105 = scalar_lea.vmem [#allocation5], %s104
    %v106 = vld [vmem:[%s105] sm:$0xff]
    %v107 = vld [vmem:[%s105 + $0x8] sm:$0xff]
    %v108 = vld [vmem:[%s105 + $0x10] sm:$0xff]
    %v109 = vld [vmem:[%s105 + $0x18] sm:$0xff]
    %v110 = vld [vmem:[%s105 + $0x20] sm:$0xff]
    %v111 = vld [vmem:[%s105 + $0x28] sm:$0xff]
    %v112 = vld [vmem:[%s105 + $0x30] sm:$0xff]
    %v113 = vld [vmem:[%s105 + $0x38] sm:$0xff]
    %v114 = vmax.f32 %v96, 0.0
    %v115 = vmax.f32 %v97, 0.0
    %v116 = vmax.f32 %v98, 0.0
    %v117 = vmax.f32 %v99, 0.0
    %v118 = vmax.f32 %v100, 0.0
    %v119 = vmax.f32 %v101, 0.0
    %v120 = vmax.f32 %v102, 0.0
    %v121 = vmax.f32 %v103, 0.0
    %v122 = vmul.f32 %v106, %v96
    %v123 = vmul.f32 %v107, %v97
    %v124 = vmul.f32 %v108, %v98
    %v125 = vmul.f32 %v109, %v99
    %v126 = vmul.f32 %v110, %v100
    %v127 = vmul.f32 %v111, %v101
    %v128 = vmul.f32 %v112, %v102
    %v129 = vmul.f32 %v113, %v103
    %v130 = vsub.f32 %v114, %v122
    %v131 = vsub.f32 %v115, %v123
    %v132 = vsub.f32 %v116, %v124
    %v133 = vsub.f32 %v117, %v125
    %v134 = vsub.f32 %v118, %v126
    %v135 = vsub.f32 %v119, %v127
    %v136 = vsub.f32 %v120, %v128
    %v137 = vsub.f32 %v121, %v129
    %v138 = vand.u32 2147483647, %v96
    %v139 = vand.u32 2147483647, %v97
    %v140 = vand.u32 2147483647, %v98
    %v141 = vand.u32 2147483647, %v99
    %v142 = vand.u32 2147483647, %v100
    %v143 = vand.u32 2147483647, %v101
    %v144 = vand.u32 2147483647, %v102
    %v145 = vand.u32 2147483647, %v103
    %v146 = vsub.f32 0.0, %v138
    %v147 = vsub.f32 0.0, %v139
    %v148 = vsub.f32 0.0, %v140
    %v149 = vsub.f32 0.0, %v141
    %v150 = vsub.f32 0.0, %v142
    %v151 = vsub.f32 0.0, %v143
    %v152 = vsub.f32 0.0, %v144
    %v153 = vsub.f32 0.0, %v145
    %v154 = vmul.f32 %v146, 1.442695
    %v155 = vpow.pop %v154
    %v156 = vmul.f32 %v147, 1.442695
    %v157 = vpow.pop %v156
    %v158 = vmul.f32 %v148, 1.442695
    %v159 = vpow.pop %v158
    %v160 = vmul.f32 %v149, 1.442695
    %v161 = vpow.pop %v160
    %v162 = vmul.f32 %v150, 1.442695
    %v163 = vpow.pop %v162
    %v164 = vmul.f32 %v151, 1.442695
    %v165 = vpow.pop %v164
    %v166 = vmul.f32 %v152, 1.442695
    %v167 = vpow.pop %v166
    %v168 = vmul.f32 %v153, 1.442695
    %v169 = vpow.pop %v168
    %v170 = vadd.f32 %v155, 1.0
    %v171 = vlog2.pop %v170
    %v172 = vmul.f32 %v171, 0.6931472
    %v173 = vmul.f32 -0.5, %v155
    %v174 = vadd.f32 %v173, 1.0
    %v175 = vmul.f32 %v174, %v155
    %v176 = vand.u32 2147483647, %v155
    %vm177 = vcmp.lt.f32.partialorder %v176, 0.0004427343
    %v178 = vsel %vm177, %v175, %v172
    %v179 = vadd.f32 %v157, 1.0
    %v180 = vlog2.pop %v179
    %v181 = vmul.f32 %v180, 0.6931472
    %v182 = vmul.f32 -0.5, %v157
    %v183 = vadd.f32 %v182, 1.0
    %v184 = vmul.f32 %v183, %v157
    %v185 = vand.u32 2147483647, %v157
    %vm186 = vcmp.lt.f32.partialorder %v185, 0.0004427343
    %v187 = vsel %vm186, %v184, %v181
    %v188 = vadd.f32 %v159, 1.0
    %v189 = vlog2.pop %v188
    %v190 = vmul.f32 %v189, 0.6931472
    %v191 = vmul.f32 -0.5, %v159
    %v192 = vadd.f32 %v191, 1.0
    %v193 = vmul.f32 %v192, %v159
    %v194 = vand.u32 2147483647, %v159
    %vm195 = vcmp.lt.f32.partialorder %v194, 0.0004427343
    %v196 = vsel %vm195, %v193, %v190
    %v197 = vadd.f32 %v161, 1.0
    %v198 = vlog2.pop %v197
    %v199 = vmul.f32 %v198, 0.6931472
    %v200 = vmul.f32 -0.5, %v161
    %v201 = vadd.f32 %v200, 1.0
    %v202 = vmul.f32 %v201, %v161
    %v203 = vand.u32 2147483647, %v161
    %vm204 = vcmp.lt.f32.partialorder %v203, 0.0004427343
    %v205 = vsel %vm204, %v202, %v199
    %v206 = vadd.f32 %v163, 1.0
    %v207 = vlog2.pop %v206
    %v208 = vmul.f32 %v207, 0.6931472
    %v209 = vmul.f32 -0.5, %v163
    %v210 = vadd.f32 %v209, 1.0
    %v211 = vmul.f32 %v210, %v163
    %v212 = vand.u32 2147483647, %v163
    %vm213 = vcmp.lt.f32.partialorder %v212, 0.0004427343
    %v214 = vsel %vm213, %v211, %v208
    %v215 = vadd.f32 %v165, 1.0
    %v216 = vlog2.pop %v215
    %v217 = vmul.f32 %v216, 0.6931472
    %v218 = vmul.f32 -0.5, %v165
    %v219 = vadd.f32 %v218, 1.0
    %v220 = vmul.f32 %v219, %v165
    %v221 = vand.u32 2147483647, %v165
    %vm222 = vcmp.lt.f32.partialorder %v221, 0.0004427343
    %v223 = vsel %vm222, %v220, %v217
    %v224 = vadd.f32 %v167, 1.0
    %v225 = vlog2.pop %v224
    %v226 = vmul.f32 %v225, 0.6931472
    %v227 = vmul.f32 -0.5, %v167
    %v228 = vadd.f32 %v227, 1.0
    %v229 = vmul.f32 %v228, %v167
    %v230 = vand.u32 2147483647, %v167
    %vm231 = vcmp.lt.f32.partialorder %v230, 0.0004427343
    %v232 = vsel %vm231, %v229, %v226
    %v233 = vadd.f32 %v169, 1.0
    %v234 = vlog2.pop %v233
    %v235 = vmul.f32 %v234, 0.6931472
    %v236 = vmul.f32 -0.5, %v169
    %v237 = vadd.f32 %v236, 1.0
    %v238 = vmul.f32 %v237, %v169
    %v239 = vand.u32 2147483647, %v169
    %vm240 = vcmp.lt.f32.partialorder %v239, 0.0004427343
    %v241 = vsel %vm240, %v238, %v235
    %v242 = vadd.f32 %v130, %v178
    %v243 = vadd.f32 %v131, %v187
    %v244 = vadd.f32 %v132, %v196
    %v245 = vadd.f32 %v133, %v205
    %v246 = vadd.f32 %v134, %v214
    %v247 = vadd.f32 %v135, %v223
    %v248 = vadd.f32 %v136, %v232
    %v249 = vadd.f32 %v137, %v241
    %s250 = smul.u32 %s92, 16
    %s251 = sadd.s32 %s250, 0
    %v252 = vlaneseq
    %v253 = vshrl.u32 %v252, 7
    %v254 = vadd.s32 %v253, 8
    %v255 = vstv %s251
    %v256 = vadd.s32 %v255, %v253
    %v257 = vadd.s32 %v255, %v254
    %vm258 = vcmp.lt.s32.totalorder %v256, 4
    %vm259 = vcmp.lt.s32.totalorder %v257, 4
    %v260 = vsel %vm258, 1, 0
    %v261 = vsel %vm259, 1, 0
    %vm262 = vcmp.eq.s32.totalorder %v260, 1
    %vm263 = vcmp.eq.s32.totalorder %v261, 1
    %272 = vst [vmem:[#allocation1] ss:$2 sm:$0xff] %v242
    %s273 = scalar_lea.vmem [#allocation1], 1
    %274 = vst [vmem:[%s273] ss:$2 sm:$0xff] %v244
    %s275 = scalar_lea.vmem [#allocation1], 16
    %276 = vst [vmem:[%s275] ss:$2 sm:$0xff] %v243
    %s277 = scalar_lea.vmem [#allocation1], 17
    %278 = vst [vmem:[%s277] ss:$2 sm:$0xff] %v245
    %s279 = scalar_lea.vmem [#allocation1], 32
    %280 = vst [vmem:[%s279] ss:$2 sm:$0xff] %v246
    %s281 = scalar_lea.vmem [#allocation1], 33
    %282 = vst [vmem:[%s281] ss:$2 sm:$0xff] %v248
    %s283 = scalar_lea.vmem [#allocation1], 48
    %284 = vst [vmem:[%s283] ss:$2 sm:$0xff] %v247
    %s285 = scalar_lea.vmem [#allocation1], 49
    %286 = vst [vmem:[%s285] ss:$2 sm:$0xff] %v249
    %v287 = vld.sshfl [vmem:[#allocation1] sm:$0xff pattern:$0x75316420]
    %v288 = vld.sshfl [vmem:[#allocation1 + $0x8] sm:$0xff pattern:$0x75316420]
    %v289 = vld.sshfl [vmem:[#allocation1 + $0x10] sm:$0xff pattern:$0x75316420]
    %v290 = vld.sshfl [vmem:[#allocation1 + $0x18] sm:$0xff pattern:$0x75316420]
    %v291 = vld.sshfl [vmem:[#allocation1 + $0x20] sm:$0xff pattern:$0x75316420]
    %v292 = vld.sshfl [vmem:[#allocation1 + $0x28] sm:$0xff pattern:$0x75316420]
    %v293 = vld.sshfl [vmem:[#allocation1 + $0x30] sm:$0xff pattern:$0x75316420]
    %v294 = vld.sshfl [vmem:[#allocation1 + $0x38] sm:$0xff pattern:$0x75316420]
    %v303 = vsel %vm262, %v287, 0.0
    %v304 = vsel %vm262, %v288, 0.0
    %v305 = vsel %vm262, %v289, 0.0
    %v306 = vsel %vm262, %v290, 0.0
    %v307 = vsel %vm263, %v291, 0.0
    %v308 = vsel %vm263, %v292, 0.0
    %v309 = vsel %vm263, %v293, 0.0
    %v310 = vsel %vm263, %v294, 0.0
    %v311 = vadd.f32 %v303, %v307
    %v312 = vadd.f32 %v304, %v308
    %v313 = vadd.f32 %v305, %v309
    %v314 = vadd.f32 %v306, %v310
    %v315 = vadd.f32 %v311, 0.0
    %v316 = vadd.f32 %v312, 0.0
    %v317 = vadd.f32 %v313, 0.0
    %v318 = vadd.f32 %v314, 0.0
    %v319 = vld [vmem:[#allocation7] sm:$0xff]
    %v320 = vld [vmem:[#allocation7 + $0x8] sm:$0xff]
    %v321 = vld [vmem:[#allocation7 + $0x10] sm:$0xff]
    %v322 = vld [vmem:[#allocation7 + $0x18] sm:$0xff]
    %v323 = vadd.f32 %v319, %v315
    %v324 = vadd.f32 %v320, %v316
    %v325 = vadd.f32 %v321, %v317
    %v326 = vadd.f32 %v322, %v318
    %327 = vst [vmem:[#allocation7] sm:$0xff] %v323
    %328 = vst [vmem:[#allocation7 + $0x8] sm:$0xff] %v324
    %329 = vst [vmem:[#allocation7 + $0x10] sm:$0xff] %v325
    %330 = vst [vmem:[#allocation7 + $0x18] sm:$0xff] %v326
    // Predicated region
    $region22: #{tpu_custom_call.1} parent=1 // pred_check
      _
    $region23: #{tpu_custom_call.1} parent=1 // pred_check_branch
      %332 = sbr.rel (0) target = $region25
    $region24: #{tpu_custom_call.1} parent=1 // pred_region
      %334 = vsyncadd [#allocation4], 0
      %s336 = sshll.u32 [#allocation7], 4
      %s337 = int_to_ptr.vmem [resolvable:$true] %s336
      %s338 = sshll.u32 %s2, 4
      %s339 = int_to_ptr.hbm [resolvable:$true] %s338
      %341 = dma.vmem_to_hbm [thread:$0]  %s337, 512, %s339, [#allocation4]
    $region25: #{tpu_custom_call.1} parent=1 // pred_fallthru
      _
    // Predicated region
    $region26: #{tpu_custom_call.1} parent=1 // pred_check
      _
    $region27: #{tpu_custom_call.1} parent=1 // pred_check_branch
      %343 = sbr.rel (0) target = $region29
    $region28: #{tpu_custom_call.1} parent=1 // pred_region
      %345 = dma.done [#allocation4], 512
    $region29: #{tpu_custom_call.1} parent=1 // pred_fallthru
      _
    %346 = vsyncpa [#allocation3], 1
    %347 = vsyncpa [#allocation6], 1
    %348 = vsyncpa [#allocation4], 1

</llo_original>
